<compile_context>
chip_gen: v5e
topology: v5e:2x2
jax: 0.10.0
libtpu: 0.0.40
codegen_flags: <defaults>
</compile_context>

<pallas_src>
import functools

import jax
import jax.numpy as jnp
from jax.experimental import pallas as pl
from jax.experimental.pallas import tpu as pltpu


HIDDEN_PAD = 128    # all hidden activations padded to 128 lanes
MAX_TILE_B = 2048   # upper bound on batch rows per grid step
MIN_TILE_B = 256    # lower bound once the batch is tiled


def _round_up(n, m):
    return ((n + m - 1) // m) * m


def _choose_tile_b(batch):
    """Pick the batch-tile size from the (static) batch dimension."""
    if batch <= MIN_TILE_B:
        return _round_up(batch, 8)            # single tile, tiny batch
    # Large batch: big tiles to amortize per-step overhead, but keep >= ~4
    # grid steps so v7x's two TensorCores / megacore sharding have work.
    target = _round_up(-(-batch // 4), 256)
    return int(min(MAX_TILE_B, max(MIN_TILE_B, target)))


def _default_bf16_epilogue():
    """bf16 elementwise epilogue on chips with a bf16 VPU (v6e / v7x)."""
    try:
        kind = jax.devices()[0].device_kind.lower()
    except Exception:
        return False
    for old in ("v2", "v3", "v4", "v5"):
        if old in kind:
            return False
    return True


def _fused_mlp_kernel(
    x_ref,
    w1_ref, t1_ref,
    w2_ref, t2_ref,
    w3_ref, t3_ref,
    w4_ref, b4_ref,
    out_ref,
    *,
    bf16_epilogue,
):
    """Forward pass for one batch tile, fully fused in VMEM.

    Weights already carry the folded BN scale; t* are the folded per-feature
    shifts, so each hidden layer is  h = relu(x @ W' + t).
    Final layer: sigmoid(h3 . w4 + b4), emitted as a lane-dense (1, TB) row.
    """
    ep_dtype = jnp.bfloat16 if bf16_epilogue else jnp.float32

    # Cast in-kernel (VPU, hidden under the DMA) instead of in the wrapper.
    h = x_ref[...].astype(jnp.bfloat16)                        # (TB, D) bf16

    def layer(h_bf, w_ref, t_ref):
        acc = jnp.dot(h_bf, w_ref[...],
                      preferred_element_type=jnp.float32)      # (TB, 128) f32
        act = jnp.maximum(acc.astype(ep_dtype) + t_ref[...].astype(ep_dtype),
                          0.0)
        return act.astype(jnp.bfloat16)

    h = layer(h, w1_ref, t1_ref)                               # (TB, 128)
    h = layer(h, w2_ref, t2_ref)                               # (TB, 128)
    h = layer(h, w3_ref, t3_ref)                               # (TB, 128)

    # Final projection as A . B^T (contraction on both minor dims) so the
    # result is lane-dense in batch and no activation-tile transpose occurs.
    # w4_ref is (8, 128) bf16 with only row 0 holding real weights.
    logits8 = jax.lax.dot_general(
        w4_ref[...], h,
        dimension_numbers=(((1,), (1,)), ((), ())),
        preferred_element_type=jnp.float32)                    # (8, TB) f32
    logits = logits8[0:1, :] + b4_ref[...]                     # (1, TB) f32

    out_ref[...] = 1.0 / (1.0 + jnp.exp(-logits))              # exact sigmoid


def _const_spec(shape):
    """Full-array block with a constant index map (operand stays resident)."""
    zeros = (0,) * len(shape)
    return pl.BlockSpec(shape, lambda i, _z=zeros: _z)


@functools.partial(jax.jit, static_argnames=("bf16_epilogue",))
def alzheimer_forward(x, params, *, bf16_epilogue=False):
    """x: [B, input_size] float32 -> [B, 1] float32 (sigmoid probabilities)."""
    (w1, t1, w2, t2, w3, t3, w4, b4) = params
    B, D = x.shape

    tile_b = _choose_tile_b(B)
    num_tiles = pl.cdiv(B, tile_b)
    B_pad = num_tiles * tile_b

    x_in = x
    if B_pad != B:
        x_in = jnp.pad(x, ((0, B_pad - B), (0, 0)))

    operands = (x_in, w1, t1, w2, t2, w3, t3, w4, b4)

    in_specs = [
        pl.BlockSpec((tile_b, D), lambda i: (i, 0)),
        _const_spec(w1.shape), _const_spec(t1.shape),
        _const_spec(w2.shape), _const_spec(t2.shape),
        _const_spec(w3.shape), _const_spec(t3.shape),
        _const_spec(w4.shape), _const_spec(b4.shape),
    ]
    # Lane-dense flat output: one (1, tile_b) row per grid step.
    out_specs = pl.BlockSpec((1, tile_b), lambda i: (0, i))

    flops = 2 * B_pad * (D * 128 + 128 * 128 + 128 * 128 + 8 * 128)
    bytes_accessed = (
        sum(int(a.size) * a.dtype.itemsize for a in operands)
        + int(B_pad) * 4
    )
    cost = pl.CostEstimate(flops=int(flops),
                           transcendentals=int(B_pad),
                           bytes_accessed=int(bytes_accessed))

    out_row = pl.pallas_call(
        functools.partial(_fused_mlp_kernel, bf16_epilogue=bf16_epilogue),
        out_shape=jax.ShapeDtypeStruct((1, B_pad), jnp.float32),
        grid_spec=pl.GridSpec(
            grid=(num_tiles,),
            in_specs=in_specs,
            out_specs=out_specs,
        ),
        compiler_params=pltpu.CompilerParams(
            dimension_semantics=("parallel",),
        ),
        cost_estimate=cost,
    )(*operands)

    return out_row[0, :B].reshape(B, 1)


def _pad2(a, rows, cols):
    r, c = a.shape
    return jnp.pad(a, ((0, rows - r), (0, cols - c)))


def make_params(key, input_size):
    """Deterministic synthetic parameters matching the PyTorch module shapes.

    Linear weights are stored [in, out]; BatchNorm1d has gamma/beta/mean/var.
    """
    eps = 1e-5
    dims = [(input_size, 128), (128, 64), (64, 32)]
    keys = jax.random.split(key, 20)
    ki = iter(range(20))

    layers = []
    for din, dout in dims:
        w = jax.random.normal(keys[next(ki)], (din, dout), jnp.float32) * 0.1
        b = jax.random.normal(keys[next(ki)], (dout,), jnp.float32) * 0.05
        gamma = 1.0 + 0.1 * jax.random.normal(keys[next(ki)], (dout,), jnp.float32)
        beta = 0.05 * jax.random.normal(keys[next(ki)], (dout,), jnp.float32)
        mean = 0.02 * jax.random.normal(keys[next(ki)], (dout,), jnp.float32)
        var = 1.0 + 0.1 * jnp.abs(
            jax.random.normal(keys[next(ki)], (dout,), jnp.float32))
        layers.append((w, b, gamma, beta, mean, var, eps))

    w4 = jax.random.normal(keys[next(ki)], (32, 1), jnp.float32) * 0.1
    b4 = jax.random.normal(keys[next(ki)], (1,), jnp.float32) * 0.05
    return layers, (w4, b4)


def fold_params(layers, output_layer):
    """Fold eval-mode BN into the weights (scale) and a per-feature shift,
    zero-pad hidden widths to 128 lanes, and cast matmul weights to bf16."""
    folded = []
    first = True
    for (w, b, gamma, beta, mean, var, eps) in layers:
        din, dout = w.shape
        scale = gamma / jnp.sqrt(var + eps)
        shift = (b - mean) * scale + beta
        w_scaled = w * scale[None, :]                # fold scale into columns (f32)
        din_p = din if first else HIDDEN_PAD
        w_p = _pad2(w_scaled, din_p, HIDDEN_PAD).astype(jnp.bfloat16)
        t_p = _pad2(shift.reshape(1, dout), 1, HIDDEN_PAD)   # f32 (pad = 0)
        folded.append((w_p, t_p))
        first = False

    w4, b4 = output_layer                                     # (32,1), (1,)
    w4_row = jnp.zeros((8, HIDDEN_PAD), jnp.float32)
    w4_row = w4_row.at[0, : w4.shape[0]].set(w4[:, 0])
    w4_row = w4_row.astype(jnp.bfloat16)                      # (8, 128) bf16
    b4_ = b4.reshape(1, 1).astype(jnp.float32)

    (w1, t1), (w2, t2), (w3, t3) = folded
    return (w1, t1, w2, t2, w3, t3, w4_row, b4_)


def reference_forward_kernel_math(x, kp, bf16_epilogue):
    """Pure-JAX mirror of the kernel's (bf16-matmul, folded-BN) math."""
    (w1, t1, w2, t2, w3, t3, w4, b4) = kp
    ep = jnp.bfloat16 if bf16_epilogue else jnp.float32
    h = x.astype(jnp.bfloat16)
    for w, t in ((w1, t1), (w2, t2), (w3, t3)):
        acc = jnp.dot(h, w, preferred_element_type=jnp.float32)
        h = jnp.maximum(acc.astype(ep) + t.astype(ep), 0.0).astype(jnp.bfloat16)
    logits = jnp.dot(h, w4.T, preferred_element_type=jnp.float32)[:, 0:1]
    logits = logits + b4[0, 0]
    return jax.nn.sigmoid(logits)


def reference_forward_f32(x, layers, output_layer):
    """Full-precision torch-eval-mode reference (BN with running stats)."""
    h = x
    for (w, b, gamma, beta, mean, var, eps) in layers:
        h = h @ w + b
        h = (h - mean) / jnp.sqrt(var + eps) * gamma + beta
        h = jnp.maximum(h, 0.0)        # dropout = identity in eval mode
    w4, b4 = output_layer
    return jax.nn.sigmoid(h @ w4 + b4)


if __name__ == "__main__":
    INPUT_SIZE = 32
    BATCH = 8

    bf16_ep = _default_bf16_epilogue()

    key = jax.random.PRNGKey(0)
    kx, kp, kx2 = jax.random.split(key, 3)
    x = jax.random.normal(kx, (BATCH, INPUT_SIZE), jnp.float32)

    layers, out_layer = make_params(kp, INPUT_SIZE)
    kernel_params = fold_params(layers, out_layer)

    # Small-batch (single-tile) path.
    out = alzheimer_forward(x, kernel_params, bf16_epilogue=bf16_ep)
    out = jax.block_until_ready(out)
    assert out.shape == (BATCH, 1)

    ref_matched = reference_forward_kernel_math(x, kernel_params, bf16_ep)
    ref_f32 = reference_forward_f32(x, layers, out_layer)
    assert jnp.allclose(out, ref_matched, atol=2e-3, rtol=2e-3), (out, ref_matched)
    assert jnp.allclose(out, ref_f32, atol=3e-2), (out, ref_f32)

    # Multi-tile path with a ragged last block (exercises padding + tiling).
    B2 = 300
    x2 = jax.random.normal(kx2, (B2, INPUT_SIZE), jnp.float32)
    out2 = alzheimer_forward(x2, kernel_params, bf16_epilogue=bf16_ep)
    out2 = jax.block_until_ready(out2)
    assert out2.shape == (B2, 1)
    ref2 = reference_forward_kernel_math(x2, kernel_params, bf16_ep)
    assert jnp.allclose(out2, ref2, atol=2e-3, rtol=2e-3), (out2, ref2)

    print("KERNEL_OK")
</pallas_src>

<mosaic_0001>
module attributes {stable_mosaic.version = 11 : i64} {
  func.func @_fused_mlp_kernel(%arg0: i32, %arg1: memref<8x32xf32, #tpu.memory_space<vmem>>, %arg2: memref<32x128xbf16, #tpu.memory_space<vmem>>, %arg3: memref<1x128xf32, #tpu.memory_space<vmem>>, %arg4: memref<128x128xbf16, #tpu.memory_space<vmem>>, %arg5: memref<1x128xf32, #tpu.memory_space<vmem>>, %arg6: memref<128x128xbf16, #tpu.memory_space<vmem>>, %arg7: memref<1x128xf32, #tpu.memory_space<vmem>>, %arg8: memref<8x128xbf16, #tpu.memory_space<vmem>>, %arg9: memref<1x1xf32, #tpu.memory_space<vmem>>, %arg10: memref<1x8xf32, #tpu.memory_space<vmem>>) attributes {dimension_semantics = [#tpu.dimension_semantics<parallel>], iteration_bounds = array<i64: 1>, scalar_prefetch = 0 : i64, scratch_operands = 0 : i64, tpu.core_type = #tpu.core_type<tc>, window_params = [{transform_indices = @transform_0, window_bounds = array<i64: 8, 32>}, {pipeline_mode = #tpu.pipeline_mode<synchronous>, transform_indices = @transform_1, window_bounds = array<i64: 32, 128>}, {pipeline_mode = #tpu.pipeline_mode<synchronous>, transform_indices = @transform_2, window_bounds = array<i64: 1, 128>}, {pipeline_mode = #tpu.pipeline_mode<synchronous>, transform_indices = @transform_3, window_bounds = array<i64: 128, 128>}, {pipeline_mode = #tpu.pipeline_mode<synchronous>, transform_indices = @transform_4, window_bounds = array<i64: 1, 128>}, {pipeline_mode = #tpu.pipeline_mode<synchronous>, transform_indices = @transform_5, window_bounds = array<i64: 128, 128>}, {pipeline_mode = #tpu.pipeline_mode<synchronous>, transform_indices = @transform_6, window_bounds = array<i64: 1, 128>}, {pipeline_mode = #tpu.pipeline_mode<synchronous>, transform_indices = @transform_7, window_bounds = array<i64: 8, 128>}, {pipeline_mode = #tpu.pipeline_mode<synchronous>, transform_indices = @transform_8, window_bounds = array<i64: 1, 1>}, {transform_indices = @transform_9, window_bounds = array<i64: 1, 8>}]} {
    %c0 = arith.constant 0 : index
    %c0_0 = arith.constant 0 : index
    %0 = vector.load %arg1[%c0, %c0_0] : memref<8x32xf32, #tpu.memory_space<vmem>>, vector<8x32xf32>
    %1 = arith.truncf %0 : vector<8x32xf32> to vector<8x32xbf16>
    %c0_1 = arith.constant 0 : index
    %c0_2 = arith.constant 0 : index
    %2 = vector.load %arg2[%c0_1, %c0_2] : memref<32x128xbf16, #tpu.memory_space<vmem>>, vector<32x128xbf16>
    %cst = arith.constant dense<0.000000e+00> : vector<8x128xf32>
    %3 = tpu.matmul %1, %2, %cst {dimension_numbers = #tpu.dot_dimension_numbers<[1], [0], [0], [1], [0, 0, 1, 1], [], []>} : vector<8x32xbf16>, vector<32x128xbf16>, vector<8x128xf32> -> vector<8x128xf32>
    %4 = arith.truncf %3 : vector<8x128xf32> to vector<8x128xbf16>
    %c0_3 = arith.constant 0 : index
    %c0_4 = arith.constant 0 : index
    %5 = vector.load %arg3[%c0_3, %c0_4] : memref<1x128xf32, #tpu.memory_space<vmem>>, vector<1x128xf32>
    %6 = arith.truncf %5 : vector<1x128xf32> to vector<1x128xbf16>
    %7 = vector.broadcast %6 : vector<1x128xbf16> to vector<8x128xbf16>
    %8 = arith.addf %4, %7 : vector<8x128xbf16>
    %cst_5 = arith.constant 0.000000e+00 : bf16
    %9 = vector.broadcast %cst_5 : bf16 to vector<8x128xbf16>
    %10 = arith.maximumf %8, %9 : vector<8x128xbf16>
    %c0_6 = arith.constant 0 : index
    %c0_7 = arith.constant 0 : index
    %11 = vector.load %arg4[%c0_6, %c0_7] : memref<128x128xbf16, #tpu.memory_space<vmem>>, vector<128x128xbf16>
    %cst_8 = arith.constant dense<0.000000e+00> : vector<8x128xf32>
    %12 = tpu.matmul %10, %11, %cst_8 {dimension_numbers = #tpu.dot_dimension_numbers<[1], [0], [0], [1], [0, 0, 1, 1], [], []>} : vector<8x128xbf16>, vector<128x128xbf16>, vector<8x128xf32> -> vector<8x128xf32>
    %13 = arith.truncf %12 : vector<8x128xf32> to vector<8x128xbf16>
    %c0_9 = arith.constant 0 : index
    %c0_10 = arith.constant 0 : index
    %14 = vector.load %arg5[%c0_9, %c0_10] : memref<1x128xf32, #tpu.memory_space<vmem>>, vector<1x128xf32>
    %15 = arith.truncf %14 : vector<1x128xf32> to vector<1x128xbf16>
    %16 = vector.broadcast %15 : vector<1x128xbf16> to vector<8x128xbf16>
    %17 = arith.addf %13, %16 : vector<8x128xbf16>
    %cst_11 = arith.constant 0.000000e+00 : bf16
    %18 = vector.broadcast %cst_11 : bf16 to vector<8x128xbf16>
    %19 = arith.maximumf %17, %18 : vector<8x128xbf16>
    %c0_12 = arith.constant 0 : index
    %c0_13 = arith.constant 0 : index
    %20 = vector.load %arg6[%c0_12, %c0_13] : memref<128x128xbf16, #tpu.memory_space<vmem>>, vector<128x128xbf16>
    %cst_14 = arith.constant dense<0.000000e+00> : vector<8x128xf32>
    %21 = tpu.matmul %19, %20, %cst_14 {dimension_numbers = #tpu.dot_dimension_numbers<[1], [0], [0], [1], [0, 0, 1, 1], [], []>} : vector<8x128xbf16>, vector<128x128xbf16>, vector<8x128xf32> -> vector<8x128xf32>
    %22 = arith.truncf %21 : vector<8x128xf32> to vector<8x128xbf16>
    %c0_15 = arith.constant 0 : index
    %c0_16 = arith.constant 0 : index
    %23 = vector.load %arg7[%c0_15, %c0_16] : memref<1x128xf32, #tpu.memory_space<vmem>>, vector<1x128xf32>
    %24 = arith.truncf %23 : vector<1x128xf32> to vector<1x128xbf16>
    %25 = vector.broadcast %24 : vector<1x128xbf16> to vector<8x128xbf16>
    %26 = arith.addf %22, %25 : vector<8x128xbf16>
    %cst_17 = arith.constant 0.000000e+00 : bf16
    %27 = vector.broadcast %cst_17 : bf16 to vector<8x128xbf16>
    %28 = arith.maximumf %26, %27 : vector<8x128xbf16>
    %c0_18 = arith.constant 0 : index
    %c0_19 = arith.constant 0 : index
    %29 = vector.load %arg8[%c0_18, %c0_19] : memref<8x128xbf16, #tpu.memory_space<vmem>>, vector<8x128xbf16>
    %cst_20 = arith.constant dense<0.000000e+00> : vector<8x8xf32>
    %30 = tpu.matmul %29, %28, %cst_20 {dimension_numbers = #tpu.dot_dimension_numbers<[1], [1], [0], [0], [0, 0, 1, 0], [], []>} : vector<8x128xbf16>, vector<8x128xbf16>, vector<8x8xf32> -> vector<8x8xf32>
    %31 = vector.extract_strided_slice %30 {offsets = [0, 0], sizes = [1, 8], strides = [1, 1]} : vector<8x8xf32> to vector<1x8xf32>
    %c0_21 = arith.constant 0 : index
    %c0_22 = arith.constant 0 : index
    %32 = vector.load %arg9[%c0_21, %c0_22] : memref<1x1xf32, #tpu.memory_space<vmem>>, vector<1x1xf32>
    %33 = vector.broadcast %32 : vector<1x1xf32> to vector<1x8xf32>
    %34 = arith.addf %31, %33 : vector<1x8xf32>
    %cst_23 = arith.constant 0.000000e+00 : f32
    %35 = vector.broadcast %cst_23 : f32 to vector<1x8xf32>
    %36 = arith.subf %35, %34 : vector<1x8xf32>
    %37 = math.exp %36 : vector<1x8xf32>
    %cst_24 = arith.constant 1.000000e+00 : f32
    %38 = vector.broadcast %cst_24 : f32 to vector<1x8xf32>
    %39 = arith.addf %38, %37 : vector<1x8xf32>
    %cst_25 = arith.constant 1.000000e+00 : f32
    %40 = vector.broadcast %cst_25 : f32 to vector<1x8xf32>
    %41 = arith.divf %40, %39 : vector<1x8xf32>
    %c0_26 = arith.constant 0 : index
    %c0_27 = arith.constant 0 : index
    %42 = vector.load %arg10[%c0_26, %c0_27] : memref<1x8xf32, #tpu.memory_space<vmem>>, vector<1x8xf32>
    tpu.vector_store %arg10[%c0_26, %c0_27], %41 {strides = array<i32>} : memref<1x8xf32, #tpu.memory_space<vmem>>, vector<1x8xf32>,
    return
  }
  func.func @transform_0(%arg0: i32) -> (i32, i32) {
    %c0_i32 = arith.constant 0 : i32
    %c0_i32_0 = arith.constant 0 : i32
    return %arg0, %c0_i32 : i32, i32
  }
  func.func @transform_1(%arg0: i32) -> (i32, i32) {
    %c0_i32 = arith.constant 0 : i32
    %c0_i32_0 = arith.constant 0 : i32
    %c0_i32_1 = arith.constant 0 : i32
    return %c0_i32, %c0_i32_0 : i32, i32
  }
  func.func @transform_2(%arg0: i32) -> (i32, i32) {
    %c0_i32 = arith.constant 0 : i32
    %c0_i32_0 = arith.constant 0 : i32
    %c0_i32_1 = arith.constant 0 : i32
    return %c0_i32, %c0_i32_0 : i32, i32
  }
  func.func @transform_3(%arg0: i32) -> (i32, i32) {
    %c0_i32 = arith.constant 0 : i32
    %c0_i32_0 = arith.constant 0 : i32
    %c0_i32_1 = arith.constant 0 : i32
    return %c0_i32, %c0_i32_0 : i32, i32
  }
  func.func @transform_4(%arg0: i32) -> (i32, i32) {
    %c0_i32 = arith.constant 0 : i32
    %c0_i32_0 = arith.constant 0 : i32
    %c0_i32_1 = arith.constant 0 : i32
    return %c0_i32, %c0_i32_0 : i32, i32
  }
  func.func @transform_5(%arg0: i32) -> (i32, i32) {
    %c0_i32 = arith.constant 0 : i32
    %c0_i32_0 = arith.constant 0 : i32
    %c0_i32_1 = arith.constant 0 : i32
    return %c0_i32, %c0_i32_0 : i32, i32
  }
  func.func @transform_6(%arg0: i32) -> (i32, i32) {
    %c0_i32 = arith.constant 0 : i32
    %c0_i32_0 = arith.constant 0 : i32
    %c0_i32_1 = arith.constant 0 : i32
    return %c0_i32, %c0_i32_0 : i32, i32
  }
  func.func @transform_7(%arg0: i32) -> (i32, i32) {
    %c0_i32 = arith.constant 0 : i32
    %c0_i32_0 = arith.constant 0 : i32
    %c0_i32_1 = arith.constant 0 : i32
    return %c0_i32, %c0_i32_0 : i32, i32
  }
  func.func @transform_8(%arg0: i32) -> (i32, i32) {
    %c0_i32 = arith.constant 0 : i32
    %c0_i32_0 = arith.constant 0 : i32
    %c0_i32_1 = arith.constant 0 : i32
    return %c0_i32, %c0_i32_0 : i32, i32
  }
  func.func @transform_9(%arg0: i32) -> (i32, i32) {
    %c0_i32 = arith.constant 0 : i32
    %c0_i32_0 = arith.constant 0 : i32
    return %c0_i32, %arg0 : i32, i32
  }
}

</mosaic_0001>

<llo_original>
// kernel: alzheimer_forward.1
$region0: #{alzheimer_forward.1}
  #allocation0 [shape = 'u32[]', space=smem, size = 0x4, offset = 0x4, fixed_abs, tag = 'smem constant byte address 0x4 - core index']
  #allocation1 [shape = 'u32[72,128]{1,0:T(1,128)}', space=vmem, size = 0x9000, scoped, tag = 'internal scratch']
  #allocation2 [shape = 'f32[1,1]{1,0:T(1,128)S(1)}', space=vmem, size = 0x200, scoped, tag = 'scoped memory for alzheimer_forward.1']
  %s0 = inlined_call_operand.hbm [shape: f32[8,32], index: 0, kind: input, shape index: {}]
  %s1 = inlined_call_operand.hbm [shape: bf16[32,128], index: 1, kind: input, shape index: {}]
  %s2 = inlined_call_operand.vmem [shape: f32[1,128], index: 2, kind: input, shape index: {}]
  %s3 = inlined_call_operand.hbm [shape: bf16[128,128], index: 3, kind: input, shape index: {}]
  %s4 = inlined_call_operand.vmem [shape: f32[1,128], index: 4, kind: input, shape index: {}]
  %s5 = inlined_call_operand.hbm [shape: bf16[128,128], index: 5, kind: input, shape index: {}]
  %s6 = inlined_call_operand.vmem [shape: f32[1,128], index: 6, kind: input, shape index: {}]
  %s7 = inlined_call_operand.vmem [shape: bf16[8,128], index: 7, kind: input, shape index: {}]
  %s8 = inlined_call_operand.<no memory space> [shape: f32[1,1], index: 8, kind: input, shape index: {}]
  %s9 = inlined_call_operand.hbm [shape: f32[1,8], index: 9, kind: output, shape index: {}]
  %s10 = sld [smem:[#allocation0]]
  $region62: #{alzheimer_forward.1} parent=0
    _
  %s12 = ssub.s32 1, %s10
  %s13 = scalar_select 0, %s12, %s10
  %v14 = vstv %s8
  %15 = vst [vmem:[#allocation2] sm:$0x1] %v14
  $region1: #{alzheimer_forward.1} parent=0
    #allocation3 [shape = 'u8[4096]{0}', space=vmem, size = 0x1000, scoped, tag = 'input window, operand 0, single buffered']
    #allocation4 [shape = 's32[1]{0}', space=sflag, size = 0x4, scoped, tag = 'scoped memory for alzheimer_forward.1']
    #allocation5 [shape = 's32[1]{0}', space=sflag, size = 0x4, scoped, tag = 'scoped memory for alzheimer_forward.1']
    #allocation6 [shape = 'u8[8192]{0}', space=vmem, size = 0x2000, scoped, tag = 'input window, operand 1, single buffered']
    #allocation7 [shape = 's32[1]{0}', space=sflag, size = 0x4, scoped, tag = 'scoped memory for alzheimer_forward.1']
    #allocation8 [shape = 'u8[32768]{0}', space=vmem, size = 0x8000, scoped, tag = 'input window, operand 3, single buffered']
    #allocation9 [shape = 'u8[32768]{0}', space=vmem, size = 0x8000, scoped, tag = 'input window, operand 5, single buffered']
    #allocation10 [shape = 's32[1]{0}', space=sflag, size = 0x4, scoped, tag = 'scoped memory for alzheimer_forward.1']
    #allocation11 [shape = 'u8[512]{0}', space=vmem, size = 0x400, scoped, tag = 'output window, operand 0, single buffered']
    %16 = vsyncpa [#allocation4], 0
    %17 = vsyncpa [#allocation7], 0
    %18 = vsyncpa [#allocation10], 0
    %19 = vsyncpa [#allocation5], 0
    // Predicated region
    $region2: #{alzheimer_forward.1} parent=1 // pred_check
      _
    $region3: #{alzheimer_forward.1} parent=1 // pred_check_branch
      %21 = sbr.rel (0) target = $region5
    $region4: #{alzheimer_forward.1} parent=1 // pred_region
      %23 = vsyncadd [#allocation4], 0
      %s25 = sshll.u32 %s0, 4
      %s26 = int_to_ptr.hbm [resolvable:$true] %s25
      %s27 = sshll.u32 [#allocation3], 4
      %s28 = int_to_ptr.vmem [resolvable:$true] %s27
      %30 = dma.hbm_to_vmem [thread:$0]  %s26, 128, %s28, [#allocation4]
    $region5: #{alzheimer_forward.1} parent=1 // pred_fallthru
      _
    // Predicated region
    $region6: #{alzheimer_forward.1} parent=1 // pred_check
      _
    $region7: #{alzheimer_forward.1} parent=1 // pred_check_branch
      %32 = sbr.rel (0) target = $region9
    $region8: #{alzheimer_forward.1} parent=1 // pred_region
      %34 = vsyncadd [#allocation7], 0
      %s35 = sshll.u32 %s1, 4
      %s36 = int_to_ptr.hbm [resolvable:$true] %s35
      %s37 = sshll.u32 [#allocation6], 4
      %s38 = int_to_ptr.vmem [resolvable:$true] %s37
      %43 = dma.hbm_to_vmem [thread:$0]  %s36, 256, %s38, [#allocation7], 64, 64, 4
    $region9: #{alzheimer_forward.1} parent=1 // pred_fallthru
      _
    // Predicated region
    $region10: #{alzheimer_forward.1} parent=1 // pred_check
      _
    $region11: #{alzheimer_forward.1} parent=1 // pred_check_branch
      %45 = sbr.rel (0) target = $region13
    $region12: #{alzheimer_forward.1} parent=1 // pred_region
      _
    $region13: #{alzheimer_forward.1} parent=1 // pred_fallthru
      _
    // Predicated region
    $region14: #{alzheimer_forward.1} parent=1 // pred_check
      _
    $region15: #{alzheimer_forward.1} parent=1 // pred_check_branch
      %47 = sbr.rel (0) target = $region17
    $region16: #{alzheimer_forward.1} parent=1 // pred_region
      %49 = vsyncadd [#allocation7], 0
      %s50 = sshll.u32 %s3, 4
      %s51 = int_to_ptr.hbm [resolvable:$true] %s50
      %s52 = sshll.u32 [#allocation8], 4
      %s53 = int_to_ptr.vmem [resolvable:$true] %s52
      %58 = dma.hbm_to_vmem [thread:$0]  %s51, 1024, %s53, [#allocation7], 64, 64, 4
    $region17: #{alzheimer_forward.1} parent=1 // pred_fallthru
      _
    // Predicated region
    $region18: #{alzheimer_forward.1} parent=1 // pred_check
      _
    $region19: #{alzheimer_forward.1} parent=1 // pred_check_branch
      %60 = sbr.rel (0) target = $region21
    $region20: #{alzheimer_forward.1} parent=1 // pred_region
      _
    $region21: #{alzheimer_forward.1} parent=1 // pred_fallthru
      _
    // Predicated region
    $region22: #{alzheimer_forward.1} parent=1 // pred_check
      _
    $region23: #{alzheimer_forward.1} parent=1 // pred_check_branch
      %62 = sbr.rel (0) target = $region25
    $region24: #{alzheimer_forward.1} parent=1 // pred_region
      %64 = vsyncadd [#allocation10], 0
      %s65 = sshll.u32 %s5, 4
      %s66 = int_to_ptr.hbm [resolvable:$true] %s65
      %s67 = sshll.u32 [#allocation9], 4
      %s68 = int_to_ptr.vmem [resolvable:$true] %s67
      %73 = dma.hbm_to_vmem [thread:$0]  %s66, 1024, %s68, [#allocation10], 64, 64, 4
    $region25: #{alzheimer_forward.1} parent=1 // pred_fallthru
      _
    // Predicated region
    $region26: #{alzheimer_forward.1} parent=1 // pred_check
      _
    $region27: #{alzheimer_forward.1} parent=1 // pred_check_branch
      %75 = sbr.rel (0) target = $region29
    $region28: #{alzheimer_forward.1} parent=1 // pred_region
      _
    $region29: #{alzheimer_forward.1} parent=1 // pred_fallthru
      _
    // Predicated region
    $region30: #{alzheimer_forward.1} parent=1 // pred_check
      _
    $region31: #{alzheimer_forward.1} parent=1 // pred_check_branch
      %77 = sbr.rel (0) target = $region33
    $region32: #{alzheimer_forward.1} parent=1 // pred_region
      _
    $region33: #{alzheimer_forward.1} parent=1 // pred_fallthru
      _
    // Predicated region
    $region34: #{alzheimer_forward.1} parent=1 // pred_check
      _
    $region35: #{alzheimer_forward.1} parent=1 // pred_check_branch
      %79 = sbr.rel (0) target = $region37
    $region36: #{alzheimer_forward.1} parent=1 // pred_region
      _
    $region37: #{alzheimer_forward.1} parent=1 // pred_fallthru
      _
    // Predicated region
    $region38: #{alzheimer_forward.1} parent=1 // pred_check
      _
    $region39: #{alzheimer_forward.1} parent=1 // pred_check_branch
      %81 = sbr.rel (0) target = $region41
    $region40: #{alzheimer_forward.1} parent=1 // pred_region
      %83 = dma.done [#allocation4], 128
    $region41: #{alzheimer_forward.1} parent=1 // pred_fallthru
      _
    // Predicated region
    $region42: #{alzheimer_forward.1} parent=1 // pred_check
      _
    $region43: #{alzheimer_forward.1} parent=1 // pred_check_branch
      %85 = sbr.rel (0) target = $region45
    $region44: #{alzheimer_forward.1} parent=1 // pred_region
      %87 = dma.done [#allocation7], 256
    $region45: #{alzheimer_forward.1} parent=1 // pred_fallthru
      _
    // Predicated region
    $region46: #{alzheimer_forward.1} parent=1 // pred_check
      _
    $region47: #{alzheimer_forward.1} parent=1 // pred_check_branch
      %89 = sbr.rel (0) target = $region49
    $region48: #{alzheimer_forward.1} parent=1 // pred_region
      %91 = dma.done [#allocation7], 1024
    $region49: #{alzheimer_forward.1} parent=1 // pred_fallthru
      _
    // Predicated region
    $region50: #{alzheimer_forward.1} parent=1 // pred_check
      _
    $region51: #{alzheimer_forward.1} parent=1 // pred_check_branch
      %93 = sbr.rel (0) target = $region53
    $region52: #{alzheimer_forward.1} parent=1 // pred_region
      %95 = dma.done [#allocation10], 1024
    $region53: #{alzheimer_forward.1} parent=1 // pred_fallthru
      _
    %v97 = vld [vmem:[#allocation3] sm:$0xff]
    %v98 = vpack.c.bf16 %v97, %v97
    %v99 = vld [vmem:[#allocation6] sm:$0xf]
    %v100 = vld [vmem:[#allocation6 + $0x4] sm:$0xf]
    %v101 = vld [vmem:[#allocation6 + $0x8] sm:$0xf]
    %v102 = vld [vmem:[#allocation6 + $0xc] sm:$0xf]
    %v107 = vunpack.c.l.b16 %v99
    %v108 = vunpack.c.l.b16 %v100
    %v109 = vunpack.c.l.b16 %v101
    %v110 = vunpack.c.l.b16 %v102
    %v111 = vpack.c.b16 %v108, %v107
    %v112 = vpack.c.b16 %v110, %v109
    %vm115 = vcmask 261120
    %v117 = vsel %vm115, %v98, 0
    %119 = vmatpush.bf16.msra.mxu0 0
    %120 = vmatpush.bf16.msra.mxu0 0
    %121 = vmatpush.bf16.msra.mxu0 0
    %122 = vmatpush.bf16.msra.mxu0 0
    %123 = vmatpush.bf16.msra.mxu0 0
    %124 = vmatpush.bf16.msra.mxu0 0
    %125 = vmatpush.bf16.msra.mxu0 %v112
    %126 = vmatpush.bf16.msra.mxu0 %v111
    %127 = vmatmul.bf16.gmra.mxu0 %v117
    %v128 = vpop.f32.mrf.mxu0
    %v129 = vadd.f32 0.0, %v128
    %v130 = vpop.f32.mrf.mxu0
    %131 = vdwg.mxu0
    %v132 = vpack.c.bf16 %v129, %v129
    %v133 = vld [vmem:[%s2] sm:$0x1]
    %v134 = vpack.c.bf16 %v133, %v133
    %v136 = vpack.i.b16 %v134, %v134
    %v138 = vperm.slane %v136, 0
    %v139 = vunpack.c.l.bf16 %v132
    %v140 = vunpack.c.l.bf16 %v138
    %v141 = vadd.f32 %v139, %v140
    %v142 = vpack.c.bf16 %v141, %v141
    %v143 = vunpack.c.l.bf16 %v142
    %v144 = vmax.f32 %v143, 0.0
    %v145 = vpack.c.bf16 %v144, %v144
    %v146 = vld [vmem:[#allocation8] sm:$0xf]
    %v147 = vld [vmem:[#allocation8 + $0x4] sm:$0xf]
    %v148 = vld [vmem:[#allocation8 + $0x8] sm:$0xf]
    %v149 = vld [vmem:[#allocation8 + $0xc] sm:$0xf]
    %v150 = vld [vmem:[#allocation8 + $0x10] sm:$0xf]
    %v151 = vld [vmem:[#allocation8 + $0x14] sm:$0xf]
    %v152 = vld [vmem:[#allocation8 + $0x18] sm:$0xf]
    %v153 = vld [vmem:[#allocation8 + $0x1c] sm:$0xf]
    %v154 = vld [vmem:[#allocation8 + $0x20] sm:$0xf]
    %v155 = vld [vmem:[#allocation8 + $0x24] sm:$0xf]
    %v156 = vld [vmem:[#allocation8 + $0x28] sm:$0xf]
    %v157 = vld [vmem:[#allocation8 + $0x2c] sm:$0xf]
    %v158 = vld [vmem:[#allocation8 + $0x30] sm:$0xf]
    %v159 = vld [vmem:[#allocation8 + $0x34] sm:$0xf]
    %v160 = vld [vmem:[#allocation8 + $0x38] sm:$0xf]
    %v161 = vld [vmem:[#allocation8 + $0x3c] sm:$0xf]
    %v178 = vunpack.c.l.b16 %v146
    %v179 = vunpack.c.l.b16 %v147
    %v180 = vunpack.c.l.b16 %v148
    %v181 = vunpack.c.l.b16 %v149
    %v182 = vunpack.c.l.b16 %v150
    %v183 = vunpack.c.l.b16 %v151
    %v184 = vunpack.c.l.b16 %v152
    %v185 = vunpack.c.l.b16 %v153
    %v186 = vunpack.c.l.b16 %v154
    %v187 = vunpack.c.l.b16 %v155
    %v188 = vunpack.c.l.b16 %v156
    %v189 = vunpack.c.l.b16 %v157
    %v190 = vunpack.c.l.b16 %v158
    %v191 = vunpack.c.l.b16 %v159
    %v192 = vunpack.c.l.b16 %v160
    %v193 = vunpack.c.l.b16 %v161
    %v194 = vpack.c.b16 %v179, %v178
    %v195 = vpack.c.b16 %v181, %v180
    %v196 = vpack.c.b16 %v183, %v182
    %v197 = vpack.c.b16 %v185, %v184
    %v198 = vpack.c.b16 %v187, %v186
    %v199 = vpack.c.b16 %v189, %v188
    %v200 = vpack.c.b16 %v191, %v190
    %v201 = vpack.c.b16 %v193, %v192
    %210 = vmatpush.bf16.msra.mxu0 %v201
    %211 = vmatpush.bf16.msra.mxu0 %v200
    %212 = vmatpush.bf16.msra.mxu0 %v199
    %213 = vmatpush.bf16.msra.mxu0 %v198
    %214 = vmatpush.bf16.msra.mxu0 %v197
    %215 = vmatpush.bf16.msra.mxu0 %v196
    %216 = vmatpush.bf16.msra.mxu0 %v195
    %217 = vmatpush.bf16.msra.mxu0 %v194
    %218 = vmatmul.bf16.gmra.mxu0 %v145
    %v219 = vpop.f32.mrf.mxu0
    %v220 = vadd.f32 0.0, %v219
    %v221 = vpop.f32.mrf.mxu0
    %222 = vdwg.mxu0
    %v223 = vpack.c.bf16 %v220, %v220
    %v224 = vld [vmem:[%s4] sm:$0x1]
    %v225 = vpack.c.bf16 %v224, %v224
    %v227 = vpack.i.b16 %v225, %v225
    %v229 = vperm.slane %v227, 0
    %v230 = vunpack.c.l.bf16 %v223
    %v231 = vunpack.c.l.bf16 %v229
    %v232 = vadd.f32 %v230, %v231
    %v233 = vpack.c.bf16 %v232, %v232
    %v234 = vunpack.c.l.bf16 %v233
    %v235 = vmax.f32 %v234, 0.0
    %v236 = vpack.c.bf16 %v235, %v235
    %v237 = vld [vmem:[#allocation9] sm:$0xf]
    %v238 = vld [vmem:[#allocation9 + $0x4] sm:$0xf]
    %v239 = vld [vmem:[#allocation9 + $0x8] sm:$0xf]
    %v240 = vld [vmem:[#allocation9 + $0xc] sm:$0xf]
    %v241 = vld [vmem:[#allocation9 + $0x10] sm:$0xf]
    %v242 = vld [vmem:[#allocation9 + $0x14] sm:$0xf]
    %v243 = vld [vmem:[#allocation9 + $0x18] sm:$0xf]
    %v244 = vld [vmem:[#allocation9 + $0x1c] sm:$0xf]
    %v245 = vld [vmem:[#allocation9 + $0x20] sm:$0xf]
    %v246 = vld [vmem:[#allocation9 + $0x24] sm:$0xf]
    %v247 = vld [vmem:[#allocation9 + $0x28] sm:$0xf]
    %v248 = vld [vmem:[#allocation9 + $0x2c] sm:$0xf]
    %v249 = vld [vmem:[#allocation9 + $0x30] sm:$0xf]
    %v250 = vld [vmem:[#allocation9 + $0x34] sm:$0xf]
    %v251 = vld [vmem:[#allocation9 + $0x38] sm:$0xf]
    %v252 = vld [vmem:[#allocation9 + $0x3c] sm:$0xf]
    %v269 = vunpack.c.l.b16 %v237
    %v270 = vunpack.c.l.b16 %v238
    %v271 = vunpack.c.l.b16 %v239
    %v272 = vunpack.c.l.b16 %v240
    %v273 = vunpack.c.l.b16 %v241
    %v274 = vunpack.c.l.b16 %v242
    %v275 = vunpack.c.l.b16 %v243
    %v276 = vunpack.c.l.b16 %v244
    %v277 = vunpack.c.l.b16 %v245
    %v278 = vunpack.c.l.b16 %v246
    %v279 = vunpack.c.l.b16 %v247
    %v280 = vunpack.c.l.b16 %v248
    %v281 = vunpack.c.l.b16 %v249
    %v282 = vunpack.c.l.b16 %v250
    %v283 = vunpack.c.l.b16 %v251
    %v284 = vunpack.c.l.b16 %v252
    %v285 = vpack.c.b16 %v270, %v269
    %v286 = vpack.c.b16 %v272, %v271
    %v287 = vpack.c.b16 %v274, %v273
    %v288 = vpack.c.b16 %v276, %v275
    %v289 = vpack.c.b16 %v278, %v277
    %v290 = vpack.c.b16 %v280, %v279
    %v291 = vpack.c.b16 %v282, %v281
    %v292 = vpack.c.b16 %v284, %v283
    %301 = vmatpush.bf16.msra.mxu0 %v292
    %302 = vmatpush.bf16.msra.mxu0 %v291
    %303 = vmatpush.bf16.msra.mxu0 %v290
    %304 = vmatpush.bf16.msra.mxu0 %v289
    %305 = vmatpush.bf16.msra.mxu0 %v288
    %306 = vmatpush.bf16.msra.mxu0 %v287
    %307 = vmatpush.bf16.msra.mxu0 %v286
    %308 = vmatpush.bf16.msra.mxu0 %v285
    %309 = vmatmul.bf16.gmra.mxu0 %v236
    %v310 = vpop.f32.mrf.mxu0
    %v311 = vadd.f32 0.0, %v310
    %v312 = vpop.f32.mrf.mxu0
    %313 = vdwg.mxu0
    %v314 = vpack.c.bf16 %v311, %v311
    %v315 = vld [vmem:[%s6] sm:$0x1]
    %v316 = vpack.c.bf16 %v315, %v315
    %v318 = vpack.i.b16 %v316, %v316
    %v320 = vperm.slane %v318, 0
    %v321 = vunpack.c.l.bf16 %v314
    %v322 = vunpack.c.l.bf16 %v320
    %v323 = vadd.f32 %v321, %v322
    %v324 = vpack.c.bf16 %v323, %v323
    %v325 = vunpack.c.l.bf16 %v324
    %v326 = vmax.f32 %v325, 0.0
    %v327 = vpack.c.bf16 %v326, %v326
    %v328 = vld [vmem:[%s7] sm:$0xf]
    %329 = vmatpush.bf16.xpose.msra.mxu0 0
    %330 = vmatpush.bf16.xpose.msra.mxu0 0
    %331 = vmatpush.bf16.xpose.msra.mxu0 0
    %332 = vmatpush.bf16.xpose.msra.mxu0 0
    %333 = vmatpush.bf16.xpose.msra.mxu0 0
    %334 = vmatpush.bf16.xpose.msra.mxu0 0
    %335 = vmatpush.bf16.xpose.msra.mxu0 0
    %336 = vmatpush.bf16.xpose.msra.mxu0 %v327
    %337 = vmatmul.bf16.gmra.mxu0 %v328
    %v338 = vpop.f32.mrf.mxu0
    %v339 = vadd.f32 0.0, %v338
    %v340 = vpop.f32.mrf.mxu0
    %341 = vdwg.mxu0
    %v342 = vld [vmem:[#allocation2] sm:$0x1]
    %344 = vset.pattern.permute.xlu0 0
    %345 = vperm.xlu0 %344, %v342
    %v346 = vpop.permute.xlu0 %345
    %v348 = vperm.slane %v346, 0
    %v349 = vadd.f32 %v339, %v348
    %v350 = vsub.f32 0.0, %v349
    %v351 = vmul.f32 %v350, 1.442695
    %v352 = vpow.pop %v351
    %v353 = vadd.f32 %v352, 1.0
    %v354 = vrcp.pop %v353
    %v355 = vmul.f32 %v353, %v354
    %v356 = vsub.f32 1.0, %v355
    %v357 = vmul.f32 %v354, %v356
    %v358 = vadd.f32 %v354, %v357
    %vm359 = vweird.f32 %v353
    %vm360 = vweird.f32 %v354
    %vm361 = vmor %vm359, %vm360
    %v362 = vsel %vm361, %v354, %v358
    %v363 = vand.u32 2147483647, %v353
    %vm364 = vcmp.eq.f32.partialorder %v363, 8.507059e+37
    %v365 = vand.u32 %v353, 2147483648
    %v366 = vor.u32 1.1754944e-38, %v365
    %v367 = vsel %vm364, %v366, %v362
    %v368 = vmul.f32 1.0, %v367
    %vm369 = vcmask 57344
    %370 = vst.msk [vmem:[#allocation11] sm:$0x1] %vm369, %v368
    // Predicated region
    $region54: #{alzheimer_forward.1} parent=1 // pred_check
      _
    $region55: #{alzheimer_forward.1} parent=1 // pred_check_branch
      %372 = sbr.rel (0) target = $region57
    $region56: #{alzheimer_forward.1} parent=1 // pred_region
      %374 = vsyncadd [#allocation5], 0
      %s376 = sshll.u32 [#allocation11], 4
      %s377 = int_to_ptr.vmem [resolvable:$true] %s376
      %s378 = sshll.u32 %s9, 4
      %s379 = int_to_ptr.hbm [resolvable:$true] %s378
      %381 = dma.vmem_to_hbm [thread:$0]  %s377, 16, %s379, [#allocation5]
    $region57: #{alzheimer_forward.1} parent=1 // pred_fallthru
      _
    // Predicated region
    $region58: #{alzheimer_forward.1} parent=1 // pred_check
      _
    $region59: #{alzheimer_forward.1} parent=1 // pred_check_branch
      %383 = sbr.rel (0) target = $region61
    $region60: #{alzheimer_forward.1} parent=1 // pred_region
      %385 = dma.done [#allocation5], 16
    $region61: #{alzheimer_forward.1} parent=1 // pred_fallthru
      _
    %386 = vsyncpa [#allocation4], 1
    %387 = vsyncpa [#allocation7], 1
    %388 = vsyncpa [#allocation10], 1
    %389 = vsyncpa [#allocation5], 1

</llo_original>
